<compile_context>
chip_gen: v7x
topology: tpu7x:2x2x1
jax: 0.10.0
libtpu: 0.0.40
codegen_flags: <defaults>
</compile_context>

<pallas_src>
import functools

import jax
import jax.numpy as jnp
import numpy as np
from jax.experimental import pallas as pl
from jax.experimental.pallas import tpu as pltpu


def _round_up(x, m):
    return ((x + m - 1) // m) * m


def _gradient_loss_kernel(mask_ref, pred_ref, targ_ref, out_ref, pad_ref, *, w, pad):
    """One grid step over a block of `bn` flattened images (L = H*W lanes).

    mask_ref : (2, L) f32, row 0 = 1.0 where x > 0, row 1 = 1.0 where x < w-1.
               Constant block (index_map -> (0,0)): DMA'd once, never recomputed.
    pred_ref, targ_ref : (bn, L) unpadded input blocks (any float dtype).
    out_ref  : (1, 1, 128) per-program partial sum (lane splat of the scalar).
    pad_ref  : (bn, pad + L + pad) f32 scratch; `pad` is a multiple of 128 with
               pad >= w + 1, giving a zero halo for every shifted tap.
    """
    bn, L = pred_ref.shape

    # conv is linear: conv(pred) - conv(target) == conv(pred - target).
    d = pred_ref[...].astype(jnp.float32) - targ_ref[...].astype(jnp.float32)

    # Zero only the two halo strips; the middle is fully overwritten below.
    # (Must run every step: scratch is uninitialized and with "parallel"
    # semantics not every core executes grid step 0.)
    pad_ref[:, :pad] = jnp.zeros((bn, pad), jnp.float32)
    pad_ref[:, pad + L:pad + L + pad] = jnp.zeros((bn, pad), jnp.float32)

    # Single (lane-aligned) store pass of the difference image.
    pad_ref[:, pad:pad + L] = d

    def tap(off):
        # d[i + off] with zero fill outside [0, L); read straight from the Ref
        # so each tap lowers to one offset vector load.
        return pad_ref[:, pad + off: pad + off + L]

    # Column masks emulate conv2d's zero padding at the left/right image edge.
    mf = mask_ref[0:1, :]   # 1.0 where x > 0
    ml = mask_ref[1:2, :]   # 1.0 where x < w - 1

    a = tap(-w - 1)   # in[y-1, x-1]
    b = tap(-1)       # in[y  , x-1]
    c = tap(w - 1)    # in[y+1, x-1]
    dd = tap(-w + 1)  # in[y-1, x+1]
    e = tap(1)        # in[y  , x+1]
    f = tap(w + 1)    # in[y+1, x+1]
    u = tap(-w)       # in[y-1, x  ]
    dn = tap(w)       # in[y+1, x  ]

    # Sobel-x / sobel-y (cross-correlation, padding=1) applied to d.
    gx = ml * (dd + 2.0 * e + f) - mf * (a + 2.0 * b + c)
    gy = mf * (c - a) + ml * (f - dd) + 2.0 * (dn - u)

    # Merged |gx| + |gy| reduction; splat into a small lane-dense output tile.
    total = jnp.sum(jnp.abs(gx) + jnp.abs(gy))
    out_ref[...] = jnp.full((1, 1, 128), total, dtype=jnp.float32)


def gradient_loss(pred, target, *, max_block_bytes=2 * 1024 * 1024):
    """pred, target: (N, 1, H, W) float arrays (NCHW, like the PyTorch module)."""
    N, C, H, W = pred.shape
    assert C == 1, "sobel weight is (1,1,3,3): single input channel required"
    L = H * W
    itemsize = max(pred.dtype.itemsize, target.dtype.itemsize)

    # Images per grid step: large blocks amortize the ~0.35us/step overhead.
    # bn is either the whole batch or a multiple of 8 (sublane-legal blocks).
    images_cap = max(1, max_block_bytes // max(1, L * itemsize))
    if N <= images_cap:
        bn = N
    elif images_cap >= 8:
        bn = (images_cap // 8) * 8
    else:
        # TODO(synk): row-tile very large single images (extra L grid axis with
        # a w-element halo); whole-image blocks are fine for typical sizes.
        bn = 1

    n_pad = _round_up(N, bn)
    G = n_pad // bn

    # Metadata-only reshape: each image becomes one lane-dense row.
    p = pred.reshape(N, L)
    t = target.reshape(N, L)
    if n_pad != N:
        # Zero images contribute zero to the sum.
        p = jnp.pad(p, ((0, n_pad - N), (0, 0)))
        t = jnp.pad(t, ((0, n_pad - N), (0, 0)))

    # Grid-invariant column masks, built once outside the kernel.
    col = jnp.arange(L, dtype=jnp.int32) % W
    masks = jnp.stack([(col > 0).astype(jnp.float32),
                       (col < (W - 1)).astype(jnp.float32)], axis=0)  # (2, L)

    pad = _round_up(W + 1, 128)
    kernel = functools.partial(_gradient_loss_kernel, w=W, pad=pad)

    partials = pl.pallas_call(
        kernel,
        out_shape=jax.ShapeDtypeStruct((G, 1, 128), jnp.float32),
        grid=(G,),
        in_specs=[
            pl.BlockSpec((2, L), lambda g: (0, 0)),      # masks: constant block
            pl.BlockSpec((bn, L), lambda g: (g, 0)),
            pl.BlockSpec((bn, L), lambda g: (g, 0)),
        ],
        out_specs=pl.BlockSpec((1, 1, 128), lambda g: (g, 0, 0)),
        scratch_shapes=[pltpu.VMEM((bn, pad + L + pad), jnp.float32)],
        compiler_params=pltpu.CompilerParams(
            dimension_semantics=("parallel",),
            vmem_limit_bytes=32 * 1024 * 1024),
    )(masks, p, t)

    # mean(|gx_p-gx_t| + mean(|gy_p-gy_t|)) == (sum|dgx| + sum|dgy|) / (N*H*W)
    return jnp.sum(partials[:, 0, 0]) * (1.0 / float(N * H * W))


def _reference_loss(pred, target):
    """Pure numpy reference reproducing the PyTorch forward."""
    sx = np.array([[-1, 0, 1], [-2, 0, 2], [-1, 0, 1]], np.float32)
    sy = np.array([[-1, -2, -1], [0, 0, 0], [1, 2, 1]], np.float32)

    def conv(x, k):
        N, C, H, W = x.shape
        xp = np.pad(x, ((0, 0), (0, 0), (1, 1), (1, 1)))
        out = np.zeros_like(x)
        for i in range(3):
            for j in range(3):
                out += k[i, j] * xp[:, :, i:i + H, j:j + W]
        return out

    gx = np.abs(conv(pred, sx) - conv(target, sx))
    gy = np.abs(conv(pred, sy) - conv(target, sy))
    return (gx + gy.mean()).mean()


if __name__ == "__main__":
    key = jax.random.PRNGKey(0)
    k1, k2 = jax.random.split(key)
    shape = (2, 1, 16, 16)  # N, C=1, H, W
    pred = jax.random.normal(k1, shape, dtype=jnp.float32)
    target = jax.random.normal(k2, shape, dtype=jnp.float32)

    loss = jax.block_until_ready(gradient_loss(pred, target))

    ref = _reference_loss(np.asarray(pred), np.asarray(target))
    np.testing.assert_allclose(np.asarray(loss), ref, rtol=1e-5, atol=1e-5)

    print("KERNEL_OK")
</pallas_src>

<mosaic_0001>
module attributes {stable_mosaic.version = 11 : i64} {
  func.func @_gradient_loss_kernel(%arg0: i32, %arg1: memref<2x256xf32, #tpu.memory_space<vmem>>, %arg2: memref<2x256xf32, #tpu.memory_space<vmem>>, %arg3: memref<2x256xf32, #tpu.memory_space<vmem>>, %arg4: memref<1x1x128xf32, #tpu.memory_space<vmem>>, %arg5: memref<2x512xf32, #tpu.memory_space<vmem>>) attributes {dimension_semantics = [#tpu.dimension_semantics<parallel>], iteration_bounds = array<i64: 1>, scalar_prefetch = 0 : i64, scratch_operands = 1 : i64, tpu.core_type = #tpu.core_type<tc>, window_params = [{pipeline_mode = #tpu.pipeline_mode<synchronous>, transform_indices = @transform_0, window_bounds = array<i64: 2, 256>}, {transform_indices = @transform_1, window_bounds = array<i64: 2, 256>}, {transform_indices = @transform_2, window_bounds = array<i64: 2, 256>}, {transform_indices = @transform_3, window_bounds = array<i64: 1, 1, 128>}]} {
    %c0 = arith.constant 0 : index
    %c0_0 = arith.constant 0 : index
    %0 = vector.load %arg2[%c0, %c0_0] : memref<2x256xf32, #tpu.memory_space<vmem>>, vector<2x256xf32>
    %c0_1 = arith.constant 0 : index
    %c0_2 = arith.constant 0 : index
    %1 = vector.load %arg3[%c0_1, %c0_2] : memref<2x256xf32, #tpu.memory_space<vmem>>, vector<2x256xf32>
    %2 = arith.subf %0, %1 : vector<2x256xf32>
    %cst = arith.constant 0.000000e+00 : f32
    %3 = vector.broadcast %cst : f32 to vector<2x128xf32>
    %c0_3 = arith.constant 0 : index
    %c0_4 = arith.constant 0 : index
    %4 = vector.load %arg5[%c0_3, %c0_4] : memref<2x512xf32, #tpu.memory_space<vmem>>, vector<2x128xf32>
    tpu.vector_store %arg5[%c0_3, %c0_4], %3 {strides = array<i32>} : memref<2x512xf32, #tpu.memory_space<vmem>>, vector<2x128xf32>,
    %cst_5 = arith.constant 0.000000e+00 : f32
    %5 = vector.broadcast %cst_5 : f32 to vector<2x128xf32>
    %c0_6 = arith.constant 0 : index
    %c384 = arith.constant 384 : index
    %6 = vector.load %arg5[%c0_6, %c384] : memref<2x512xf32, #tpu.memory_space<vmem>>, vector<2x128xf32>
    tpu.vector_store %arg5[%c0_6, %c384], %5 {strides = array<i32>} : memref<2x512xf32, #tpu.memory_space<vmem>>, vector<2x128xf32>,
    %c0_7 = arith.constant 0 : index
    %c128 = arith.constant 128 : index
    %7 = vector.load %arg5[%c0_7, %c128] : memref<2x512xf32, #tpu.memory_space<vmem>>, vector<2x256xf32>
    tpu.vector_store %arg5[%c0_7, %c128], %2 {strides = array<i32>} : memref<2x512xf32, #tpu.memory_space<vmem>>, vector<2x256xf32>,
    %c0_8 = arith.constant 0 : index
    %c0_9 = arith.constant 0 : index
    %8 = vector.load %arg1[%c0_8, %c0_9] : memref<2x256xf32, #tpu.memory_space<vmem>>, vector<1x256xf32>
    %c1 = arith.constant 1 : index
    %c0_10 = arith.constant 0 : index
    %9 = vector.load %arg1[%c1, %c0_10] : memref<2x256xf32, #tpu.memory_space<vmem>>, vector<1x256xf32>
    %c0_11 = arith.constant 0 : index
    %c111 = arith.constant 111 : index
    %10 = vector.load %arg5[%c0_11, %c111] : memref<2x512xf32, #tpu.memory_space<vmem>>, vector<2x256xf32>
    %c0_12 = arith.constant 0 : index
    %c127 = arith.constant 127 : index
    %11 = vector.load %arg5[%c0_12, %c127] : memref<2x512xf32, #tpu.memory_space<vmem>>, vector<2x256xf32>
    %c0_13 = arith.constant 0 : index
    %c143 = arith.constant 143 : index
    %12 = vector.load %arg5[%c0_13, %c143] : memref<2x512xf32, #tpu.memory_space<vmem>>, vector<2x256xf32>
    %c0_14 = arith.constant 0 : index
    %c113 = arith.constant 113 : index
    %13 = vector.load %arg5[%c0_14, %c113] : memref<2x512xf32, #tpu.memory_space<vmem>>, vector<2x256xf32>
    %c0_15 = arith.constant 0 : index
    %c129 = arith.constant 129 : index
    %14 = vector.load %arg5[%c0_15, %c129] : memref<2x512xf32, #tpu.memory_space<vmem>>, vector<2x256xf32>
    %c0_16 = arith.constant 0 : index
    %c145 = arith.constant 145 : index
    %15 = vector.load %arg5[%c0_16, %c145] : memref<2x512xf32, #tpu.memory_space<vmem>>, vector<2x256xf32>
    %c0_17 = arith.constant 0 : index
    %c112 = arith.constant 112 : index
    %16 = vector.load %arg5[%c0_17, %c112] : memref<2x512xf32, #tpu.memory_space<vmem>>, vector<2x256xf32>
    %c0_18 = arith.constant 0 : index
    %c144 = arith.constant 144 : index
    %17 = vector.load %arg5[%c0_18, %c144] : memref<2x512xf32, #tpu.memory_space<vmem>>, vector<2x256xf32>
    %cst_19 = arith.constant 2.000000e+00 : f32
    %18 = vector.broadcast %cst_19 : f32 to vector<2x256xf32>
    %19 = arith.mulf %18, %14 : vector<2x256xf32>
    %20 = arith.addf %13, %19 : vector<2x256xf32>
    %21 = arith.addf %20, %15 : vector<2x256xf32>
    %22 = vector.broadcast %9 : vector<1x256xf32> to vector<2x256xf32>
    %23 = arith.mulf %22, %21 : vector<2x256xf32>
    %cst_20 = arith.constant 2.000000e+00 : f32
    %24 = vector.broadcast %cst_20 : f32 to vector<2x256xf32>
    %25 = arith.mulf %24, %11 : vector<2x256xf32>
    %26 = arith.addf %10, %25 : vector<2x256xf32>
    %27 = arith.addf %26, %12 : vector<2x256xf32>
    %28 = vector.broadcast %8 : vector<1x256xf32> to vector<2x256xf32>
    %29 = arith.mulf %28, %27 : vector<2x256xf32>
    %30 = arith.subf %23, %29 : vector<2x256xf32>
    %31 = arith.subf %12, %10 : vector<2x256xf32>
    %32 = vector.broadcast %8 : vector<1x256xf32> to vector<2x256xf32>
    %33 = arith.mulf %32, %31 : vector<2x256xf32>
    %34 = arith.subf %15, %13 : vector<2x256xf32>
    %35 = vector.broadcast %9 : vector<1x256xf32> to vector<2x256xf32>
    %36 = arith.mulf %35, %34 : vector<2x256xf32>
    %37 = arith.addf %33, %36 : vector<2x256xf32>
    %38 = arith.subf %17, %16 : vector<2x256xf32>
    %cst_21 = arith.constant 2.000000e+00 : f32
    %39 = vector.broadcast %cst_21 : f32 to vector<2x256xf32>
    %40 = arith.mulf %39, %38 : vector<2x256xf32>
    %41 = arith.addf %37, %40 : vector<2x256xf32>
    %42 = math.absf %30 : vector<2x256xf32>
    %43 = math.absf %41 : vector<2x256xf32>
    %44 = arith.addf %42, %43 : vector<2x256xf32>
    %45 = vector.shape_cast %44 : vector<2x256xf32> to vector<1x2x256xf32>
    %cst_22 = arith.constant dense<0.000000e+00> : vector<1xf32>
    %46 = vector.multi_reduction <add>, %45, %cst_22 [1, 2] : vector<1x2x256xf32> to vector<1xf32>
    %47 = vector.shape_cast %46 : vector<1xf32> to vector<1x1x1xf32>
    %48 = vector.extract %47[0, 0, 0] : f32 from vector<1x1x1xf32>
    %49 = vector.broadcast %48 : f32 to vector<1x1x128xf32>
    %c0_23 = arith.constant 0 : index
    %c0_24 = arith.constant 0 : index
    %c0_25 = arith.constant 0 : index
    %50 = vector.load %arg4[%c0_23, %c0_24, %c0_25] : memref<1x1x128xf32, #tpu.memory_space<vmem>>, vector<1x1x128xf32>
    tpu.vector_store %arg4[%c0_23, %c0_24, %c0_25], %49 {strides = array<i32>} : memref<1x1x128xf32, #tpu.memory_space<vmem>>, vector<1x1x128xf32>,
    return
  }
  func.func @transform_0(%arg0: i32) -> (i32, i32) {
    %c0_i32 = arith.constant 0 : i32
    %c0_i32_0 = arith.constant 0 : i32
    %c0_i32_1 = arith.constant 0 : i32
    return %c0_i32, %c0_i32_0 : i32, i32
  }
  func.func @transform_1(%arg0: i32) -> (i32, i32) {
    %c0_i32 = arith.constant 0 : i32
    %c0_i32_0 = arith.constant 0 : i32
    return %arg0, %c0_i32 : i32, i32
  }
  func.func @transform_2(%arg0: i32) -> (i32, i32) {
    %c0_i32 = arith.constant 0 : i32
    %c0_i32_0 = arith.constant 0 : i32
    return %arg0, %c0_i32 : i32, i32
  }
  func.func @transform_3(%arg0: i32) -> (i32, i32, i32) {
    %c0_i32 = arith.constant 0 : i32
    %c0_i32_0 = arith.constant 0 : i32
    %c0_i32_1 = arith.constant 0 : i32
    return %arg0, %c0_i32, %c0_i32_0 : i32, i32, i32
  }
}

</mosaic_0001>

<llo_original>
// kernel: tpu_custom_call.1
$region0: #{tpu_custom_call.1}
  #allocation0 [shape = 'u32[]', space=smem, size = 0x4, offset = 0x4, fixed_abs, tag = 'smem constant byte address 0x4 - core index']
  #allocation1 [shape = 'u32[144,128]{1,0:T(1,128)}', space=vmem, size = 0x12000, scoped, tag = 'internal scratch']
  #allocation2 [shape = 'f32[2,512]{1,0:T(2,128)}', space=vmem, size = 0x1000, scoped, tag = 'scratch operand']
  %s0 = inlined_call_operand.hbm [shape: f32[2,256], index: 0, kind: input, shape index: {}]
  %s1 = inlined_call_operand.hbm [shape: f32[2,256], index: 1, kind: input, shape index: {}]
  %s2 = inlined_call_operand.vmem [shape: f32[2,256], index: 2, kind: input, shape index: {}]
  %s3 = inlined_call_operand.hbm [shape: f32[1,1,128], index: 3, kind: output, shape index: {}]
  %s4 = sld [smem:[#allocation0]]
  $region30: #{tpu_custom_call.1} parent=0
    _
  %s6 = ssub.s32 1, %s4
  %s7 = scalar_select 0, %s6, %s4
  $region1: #{tpu_custom_call.1} parent=0
    #allocation3 [shape = 'u8[2048]{0}', space=vmem, size = 0x800, scoped, tag = 'input window, operand 0, single buffered']
    #allocation4 [shape = 's32[1]{0}', space=sflag, size = 0x4, scoped, tag = 'scoped memory for tpu_custom_call.1']
    #allocation5 [shape = 's32[1]{0}', space=sflag, size = 0x4, scoped, tag = 'scoped memory for tpu_custom_call.1']
    #allocation6 [shape = 'u8[2048]{0}', space=vmem, size = 0x800, scoped, tag = 'input window, operand 1, single buffered']
    #allocation7 [shape = 's32[1]{0}', space=sflag, size = 0x4, scoped, tag = 'scoped memory for tpu_custom_call.1']
    #allocation8 [shape = 'u8[512]{0}', space=vmem, size = 0x400, scoped, tag = 'output window, operand 0, single buffered']
    %8 = vsyncpa [#allocation4], 0
    %9 = vsyncpa [#allocation7], 0
    %10 = vsyncpa [#allocation5], 0
    // Predicated region
    $region2: #{tpu_custom_call.1} parent=1 // pred_check
      _
    $region3: #{tpu_custom_call.1} parent=1 // pred_check_branch
      %12 = sbr.rel (0) target = $region5
    $region4: #{tpu_custom_call.1} parent=1 // pred_region
      %s14 = ssub.s32 64, 64
      %15 = vsyncadd [#allocation4], %s14
      %s17 = sshll.u32 [#allocation3], 4
      %s18 = int_to_ptr.vmem [resolvable:$true] %s17
      %20 = dma.hbm_to_vmem [thread:$0]  %s0, 64, %s18, [#allocation4]
    $region5: #{tpu_custom_call.1} parent=1 // pred_fallthru
      _
    // Predicated region
    $region6: #{tpu_custom_call.1} parent=1 // pred_check
      _
    $region7: #{tpu_custom_call.1} parent=1 // pred_check_branch
      %22 = sbr.rel (0) target = $region9
    $region8: #{tpu_custom_call.1} parent=1 // pred_region
      %s24 = ssub.s32 64, 64
      %25 = vsyncadd [#allocation7], %s24
      %s27 = sshll.u32 [#allocation6], 4
      %s28 = int_to_ptr.vmem [resolvable:$true] %s27
      %30 = dma.hbm_to_vmem [thread:$0]  %s1, 64, %s28, [#allocation7]
    $region9: #{tpu_custom_call.1} parent=1 // pred_fallthru
      _
    // Predicated region
    $region10: #{tpu_custom_call.1} parent=1 // pred_check
      _
    $region11: #{tpu_custom_call.1} parent=1 // pred_check_branch
      %32 = sbr.rel (0) target = $region13
    $region12: #{tpu_custom_call.1} parent=1 // pred_region
      _
    $region13: #{tpu_custom_call.1} parent=1 // pred_fallthru
      _
    // Predicated region
    $region14: #{tpu_custom_call.1} parent=1 // pred_check
      _
    $region15: #{tpu_custom_call.1} parent=1 // pred_check_branch
      %34 = sbr.rel (0) target = $region17
    $region16: #{tpu_custom_call.1} parent=1 // pred_region
      %35 = dma.done [#allocation4], 64
    $region17: #{tpu_custom_call.1} parent=1 // pred_fallthru
      _
    // Predicated region
    $region18: #{tpu_custom_call.1} parent=1 // pred_check
      _
    $region19: #{tpu_custom_call.1} parent=1 // pred_check_branch
      %37 = sbr.rel (0) target = $region21
    $region20: #{tpu_custom_call.1} parent=1 // pred_region
      %38 = dma.done [#allocation7], 64
    $region21: #{tpu_custom_call.1} parent=1 // pred_fallthru
      _
    %v39 = vld [vmem:[#allocation6] sm:$0xf]
    %v40 = vld [vmem:[%s2] sm:$0xf]
    %v41 = vsub.f32 %v39, %v40
    %42 = vst [vmem:[#allocation2] sm:$0x3] 0.0
    %43 = vst [vmem:[#allocation2 + $0x6] sm:$0x3] 0.0
    %44 = vst [vmem:[#allocation2 + $0x2] sm:$0xf] %v41
    %v45 = vld [vmem:[#allocation3] ss:$2 sm:$0x3]
    %s46 = scalar_lea.vmem [#allocation3], 1
    %v47 = vld [vmem:[%s46] ss:$2 sm:$0x3]
    %v48 = vld [vmem:[#allocation2] sm:$0x3f]
    %v49 = vld [vmem:[#allocation2 + $0x2] sm:$0x3f]
    %v50 = vmul.f32 %v49, 2.0
    %52 = vrot.lane.b32.xlu0 %v50, 112
    %v53 = vpop.permute.xlu0 %52
    %v54 = vrot.slane %v53, 6
    %vm55 = vcmask 916480
    %v56 = vsel %vm55, %v54, %v53
    %v58 = vadd.f32 %v48, %v56
    %60 = vrot.lane.b32.xlu0 %v49, 96
    %v61 = vpop.permute.xlu0 %60
    %v62 = vrot.slane %v61, 6
    %vm63 = vcmask 785408
    %v64 = vsel %vm63, %v62, %v61
    %v66 = vadd.f32 %v58, %v64
    %v68 = vlaneseq
    %v69 = vshrl.u32 %v68, 7
    %v70 = vsub.s32 0, %v69
    %v71 = vrot.slane %v47, %v70
    %v72 = vlaneseq
    %v73 = vshrl.u32 %v72, 7
    %v74 = vsub.s32 1, %v73
    %v75 = vrot.slane %v47, %v74
    %v79 = vcombine.high %v66, %v66
    %v81 = vunpack.c.l.s4 1983009808
    %v82 = vunpack.c.0.s8 %v81
    %v83 = vlaneseq
    %v84 = vshrl.u32 %v83, 7
    %v85 = vsub.s32 %v82, %v84
    %v86 = vrot.slane %v66, %v85
    %v88 = vunpack.c.l.s4 1983009808
    %v89 = vunpack.c.0.s8 %v88
    %v90 = vlaneseq
    %v91 = vshrl.u32 %v90, 7
    %v92 = vsub.s32 %v89, %v91
    %v93 = vrot.slane %v79, %v92
    %v94 = vcombine.high %v86, %v86
    %95 = vrot.lane.b32.xlu0 %v86, 15
    %v96 = vpop.permute.xlu0 %95
    %97 = vrot.lane.b32.xlu0 %v94, 15
    %v98 = vpop.permute.xlu0 %97
    %99 = vrot.lane.b32.xlu0 %v93, 15
    %v100 = vpop.permute.xlu0 %99
    %vm101 = vcmask 121856
    %v102 = vsel %vm101, %v96, %v98
    %v103 = vsel %vm101, %v98, %v100
    %v106 = vmul.f32 %v71, %v102
    %v107 = vmul.f32 %v75, %v103
    %v108 = vmul.f32 %v48, 2.0
    %110 = vrot.lane.b32.xlu0 %v108, 112
    %v111 = vpop.permute.xlu0 %110
    %v112 = vrot.slane %v111, 2
    %v113 = vsel %vm55, %v111, %v112
    %v115 = vadd.f32 %v48, %v113
    %v116 = vadd.f32 %v115, %v64
    %v118 = vlaneseq
    %v119 = vshrl.u32 %v118, 7
    %v120 = vsub.s32 0, %v119
    %v121 = vrot.slane %v45, %v120
    %v122 = vlaneseq
    %v123 = vshrl.u32 %v122, 7
    %v124 = vsub.s32 1, %v123
    %v125 = vrot.slane %v45, %v124
    %v129 = vcombine.high %v116, %v116
    %v131 = vunpack.c.l.s4 1983009808
    %v132 = vunpack.c.0.s8 %v131
    %v133 = vlaneseq
    %v134 = vshrl.u32 %v133, 7
    %v135 = vsub.s32 %v132, %v134
    %v136 = vrot.slane %v116, %v135
    %v138 = vunpack.c.l.s4 1983009808
    %v139 = vunpack.c.0.s8 %v138
    %v140 = vlaneseq
    %v141 = vshrl.u32 %v140, 7
    %v142 = vsub.s32 %v139, %v141
    %v143 = vrot.slane %v129, %v142
    %v144 = vcombine.high %v136, %v136
    %145 = vrot.lane.b32.xlu0 %v136, 17
    %v146 = vpop.permute.xlu0 %145
    %147 = vrot.lane.b32.xlu0 %v144, 17
    %v148 = vpop.permute.xlu0 %147
    %149 = vrot.lane.b32.xlu0 %v143, 17
    %v150 = vpop.permute.xlu0 %149
    %vm151 = vcmask 138240
    %v152 = vsel %vm151, %v146, %v148
    %v153 = vsel %vm151, %v148, %v150
    %v156 = vmul.f32 %v121, %v152
    %v157 = vmul.f32 %v125, %v153
    %v158 = vsub.f32 %v106, %v156
    %v159 = vsub.f32 %v107, %v157
    %161 = vrot.lane.b32.xlu0 %v48, 32
    %v162 = vpop.permute.xlu0 %161
    %v163 = vrot.slane %v162, 2
    %vm164 = vcmask 261120
    %v165 = vsel %vm164, %v162, %v163
    %v167 = vsub.f32 %v49, %v165
    %v169 = vcombine.high %v167, %v167
    %v171 = vunpack.c.l.s4 1983009808
    %v172 = vunpack.c.0.s8 %v171
    %v173 = vlaneseq
    %v174 = vshrl.u32 %v173, 7
    %v175 = vsub.s32 %v172, %v174
    %v176 = vrot.slane %v167, %v175
    %v178 = vunpack.c.l.s4 1983009808
    %v179 = vunpack.c.0.s8 %v178
    %v180 = vlaneseq
    %v181 = vshrl.u32 %v180, 7
    %v182 = vsub.s32 %v179, %v181
    %v183 = vrot.slane %v169, %v182
    %v184 = vcombine.high %v176, %v176
    %185 = vrot.lane.b32.xlu0 %v176, 113
    %v186 = vpop.permute.xlu0 %185
    %187 = vrot.lane.b32.xlu0 %v184, 113
    %v188 = vpop.permute.xlu0 %187
    %189 = vrot.lane.b32.xlu0 %v183, 113
    %v190 = vpop.permute.xlu0 %189
    %vm191 = vcmask 924672
    %v192 = vsel %vm191, %v186, %v188
    %v193 = vsel %vm191, %v188, %v190
    %v196 = vmul.f32 %v121, %v192
    %v197 = vmul.f32 %v125, %v193
    %198 = vrot.lane.b32.xlu0 %v176, 111
    %v199 = vpop.permute.xlu0 %198
    %200 = vrot.lane.b32.xlu0 %v184, 111
    %v201 = vpop.permute.xlu0 %200
    %202 = vrot.lane.b32.xlu0 %v183, 111
    %v203 = vpop.permute.xlu0 %202
    %vm204 = vcmask 908288
    %v205 = vsel %vm204, %v199, %v201
    %v206 = vsel %vm204, %v201, %v203
    %v209 = vmul.f32 %v71, %v205
    %v210 = vmul.f32 %v75, %v206
    %v211 = vadd.f32 %v196, %v209
    %v212 = vadd.f32 %v197, %v210
    %v213 = vmul.f32 %v167, 2.0
    %v215 = vcombine.high %v213, %v213
    %v217 = vunpack.c.l.s4 1983009808
    %v218 = vunpack.c.0.s8 %v217
    %v219 = vlaneseq
    %v220 = vshrl.u32 %v219, 7
    %v221 = vsub.s32 %v218, %v220
    %v222 = vrot.slane %v213, %v221
    %v224 = vunpack.c.l.s4 1983009808
    %v225 = vunpack.c.0.s8 %v224
    %v226 = vlaneseq
    %v227 = vshrl.u32 %v226, 7
    %v228 = vsub.s32 %v225, %v227
    %v229 = vrot.slane %v215, %v228
    %v230 = vcombine.high %v222, %v222
    %231 = vrot.lane.b32.xlu0 %v222, 112
    %v232 = vpop.permute.xlu0 %231
    %233 = vrot.lane.b32.xlu0 %v230, 112
    %v234 = vpop.permute.xlu0 %233
    %235 = vrot.lane.b32.xlu0 %v229, 112
    %v236 = vpop.permute.xlu0 %235
    %v237 = vsel %vm55, %v232, %v234
    %v238 = vsel %vm55, %v234, %v236
    %v241 = vadd.f32 %v211, %v237
    %v242 = vadd.f32 %v212, %v238
    %v243 = vand.u32 2147483647, %v158
    %v244 = vand.u32 2147483647, %v159
    %v245 = vand.u32 2147483647, %v241
    %v246 = vand.u32 2147483647, %v242
    %v247 = vadd.f32 %v243, %v245
    %v248 = vadd.f32 %v244, %v246
    %vm249 = vcmask 1041408
    %v250 = vsel %vm249, %v247, 0.0
    %v251 = vsel %vm249, %v248, 0.0
    %v252 = vadd.f32 %v250, %v251
    %253 = vadd.xlane.f32.xlu0 %v252
    %v254 = vpop.xlane.xlu0 %253
    %v255 = vrot.slane %v254, 4
    %v256 = vadd.f32 %v254, %v255
    %v257 = vrot.slane %v256, 2
    %v258 = vadd.f32 %v256, %v257
    %v259 = vrot.slane %v258, 1
    %v260 = vadd.f32 %v258, %v259
    %s261 = vtos %v260
    %v262 = vstv %s261
    %263 = vst [vmem:[#allocation8] sm:$0x1] %v262
    // Predicated region
    $region22: #{tpu_custom_call.1} parent=1 // pred_check
      _
    $region23: #{tpu_custom_call.1} parent=1 // pred_check_branch
      %265 = sbr.rel (0) target = $region25
    $region24: #{tpu_custom_call.1} parent=1 // pred_region
      %s267 = ssub.s32 16, 16
      %268 = vsyncadd [#allocation5], %s267
      %s270 = sshll.u32 [#allocation8], 4
      %s271 = int_to_ptr.vmem [resolvable:$true] %s270
      %273 = dma.vmem_to_hbm [thread:$0]  %s271, 16, %s3, [#allocation5]
    $region25: #{tpu_custom_call.1} parent=1 // pred_fallthru
      _
    // Predicated region
    $region26: #{tpu_custom_call.1} parent=1 // pred_check
      _
    $region27: #{tpu_custom_call.1} parent=1 // pred_check_branch
      %275 = sbr.rel (0) target = $region29
    $region28: #{tpu_custom_call.1} parent=1 // pred_region
      %276 = dma.done [#allocation5], 16
    $region29: #{tpu_custom_call.1} parent=1 // pred_fallthru
      _
    %277 = vsyncpa [#allocation4], 1
    %278 = vsyncpa [#allocation7], 1
    %279 = vsyncpa [#allocation5], 1

</llo_original>
